<compile_context>
chip_gen: v5e
topology: v5e:2x2
jax: 0.10.0
libtpu: 0.0.40
codegen_flags: <defaults>
</compile_context>

<pallas_src>
import functools

import jax
import jax.numpy as jnp
import numpy as np
from jax.experimental import pallas as pl
from jax.experimental.pallas import tpu as pltpu


# -----------------------------------------------------------------------------
# Helpers
# -----------------------------------------------------------------------------
def _round_up(x, m):
    return (x + m - 1) // m * m


def _cdiv(a, b):
    return (a + b - 1) // b


def _validate_dims(dims):
    if len(dims) < 1 or any(int(d) % 4 != 0 for d in dims):
        raise ValueError(
            f"MyMLP requires every entry of dims to be a positive multiple of "
            f"4 (got {tuple(dims)}); the PyTorch module implicitly assumes it.")


# -----------------------------------------------------------------------------
# Kernel: per batch tile, every layer is  tanh(s @ W + e @ C + b)
# -----------------------------------------------------------------------------
def _make_kernel(num_layers, compute_dtype):
    L = num_layers

    def kernel(*refs):
        x_ref, probs_ref = refs[0], refs[1]
        out_ref = refs[-1]
        it = iter(refs[2:-1])

        def nxt():
            return next(it)[...]

        def mm(a, w):
            return jnp.dot(a, w, preferred_element_type=jnp.float32)

        def to_mxu(a):
            return a.astype(compute_dtype)

        emb_w = nxt()
        w0, b0 = nxt(), nxt()
        enc = [(nxt(), nxt(), nxt()) for _ in range(L - 1)]   # layers 1..L-1
        dec = [(nxt(), nxt(), nxt()) for _ in range(L)]

        # emb_pref; probs is already masked (and cast) in the wrapper.
        e = to_mxu(mm(probs_ref[...], emb_w))                 # (TB, cond_dim)

        # Encoder. s = [latent_z | latent_h]; all concat-with-projection steps
        # are pre-folded into (W, C, b), so no lane concats/slices in-kernel.
        s = jnp.tanh(mm(x_ref[...], w0) + b0)                 # fused ind||cate
        for w, c, b in enc:                                   # block-diagonal
            s = jnp.tanh(mm(to_mxu(s), w) + mm(e, c) + b)

        # Decoder (reversed proj layers folded in); last layer has no tanh.
        for j, (w, c, b) in enumerate(dec):
            pre = mm(to_mxu(s), w) + mm(e, c) + b
            s = jnp.tanh(pre) if j < L - 1 else pre

        out_ref[...] = s.astype(out_ref.dtype)

    return kernel


# -----------------------------------------------------------------------------
# Parameters (same shapes as the PyTorch module, weights pre-transposed)
# -----------------------------------------------------------------------------
def init_params(key, n_item, n_cate, dims, dim_step):
    keys = iter(jax.random.split(key, 8 * len(dims) + 4))
    cond_dim = dims[-1] // 4

    def linear_params(d_in, d_out):
        bound = 1.0 / np.sqrt(d_in)
        w = jax.random.uniform(next(keys), (d_in, d_out), jnp.float32, -bound, bound)
        b = jax.random.uniform(next(keys), (1, d_out), jnp.float32, -bound, bound)
        return (w, b)

    ind_in = [n_item + dim_step] + [d // 2 for d in dims[:-1]]
    ind_out = [d // 2 for d in dims]
    cate_out = [d // 2 - d // 4 for d in dims]
    cond_dims = [d // 2 - d // 4 for d in dims[:-1]]
    dec_in = list(dims[::-1])
    dec_out = [d - d // 4 for d in dec_in[1:]] + [n_item]

    return {
        "emb": jax.random.normal(next(keys), (n_cate, cond_dim), jnp.float32),
        "enc_ind": [linear_params(i, o) for i, o in zip(ind_in, ind_out)],
        "enc_cate": [linear_params(i, o) for i, o in zip(ind_in, cate_out)],
        "proj": [linear_params(cond_dim, o) for o in cond_dims],
        "dec": [linear_params(i, o) for i, o in zip(dec_in, dec_out)],
    }


# -----------------------------------------------------------------------------
# One-time weight transform: fold proj/concat path into the layer weights.
# -----------------------------------------------------------------------------
def prepare_weights(params, *, n_item, dims, use_bf16=False):
    """Host-side transform (call once, outside the hot path).

    Returns a flat list:
      [E, W0, b0,  (Wenc, Cenc, benc) x (L-1),  (Wdec, Cdec, bdec) x L]
    such that the kernel computes tanh(s @ W + e @ C + b) per layer.
    """
    dims = tuple(int(d) for d in dims)
    _validate_dims(dims)
    L = len(dims)
    cond_dim = dims[-1] // 4
    z = [d // 2 for d in dims]                 # enc_ind output widths
    h = [d // 2 - d // 4 for d in dims]        # enc_cate output widths
    wt = jnp.bfloat16 if use_bf16 else jnp.float32

    def w_cast(a):
        return jnp.asarray(a, jnp.float32).astype(wt)

    def b_cast(a):
        return jnp.asarray(a, jnp.float32)     # biases always f32

    enc_ind, enc_cate = params["enc_ind"], params["enc_cate"]
    proj, dec = params["proj"], params["dec"]

    weights = [w_cast(params["emb"])]

    # Encoder layer 0: ind & cate share the same input x -> fuse along N.
    wi0, bi0 = enc_ind[0]
    wc0, bc0 = enc_cate[0]
    weights += [w_cast(jnp.concatenate([wi0, wc0], axis=1)),
                b_cast(jnp.concatenate([bi0, bc0], axis=1))]

    # Encoder layers 1..L-1: block-diagonal (ind, cate_top) main weight + a
    # conditioning weight folding proj[idx-1] into cate's bottom K rows.
    for idx in range(1, L):
        wi, bi = enc_ind[idx]
        wc, bc = enc_cate[idx]
        top = h[idx - 1]                       # rows of Wc fed by latent_h
        wc_top, wc_bot = wc[:top], wc[top:]    # bottom rows fed by pe
        if h[idx - 1] == cond_dim:             # pe was emb_pref itself
            ce = jnp.asarray(wc_bot, jnp.float32)
            bc_eff = jnp.asarray(bc, jnp.float32)
        else:                                  # pe = proj[idx-1](emb_pref)
            pw, pb = proj[idx - 1]
            ce = jnp.dot(pw, wc_bot)
            bc_eff = bc + jnp.dot(pb, wc_bot)
        zp, hp, zc, hc = z[idx - 1], h[idx - 1], z[idx], h[idx]
        wblk = jnp.zeros((zp + hp, zc + hc), jnp.float32)
        wblk = wblk.at[:zp, :zc].set(wi)
        wblk = wblk.at[zp:, zc:].set(wc_top)
        cfull = jnp.concatenate(
            [jnp.zeros((cond_dim, zc), jnp.float32), ce], axis=1)
        bfull = jnp.concatenate([bi, bc_eff], axis=1)
        weights += [w_cast(wblk), w_cast(cfull), b_cast(bfull)]

    # Decoder: split each layer's K rows into (state, conditioning) and fold
    # the reversed proj layers into the conditioning weight / bias.
    dec_in = list(dims[::-1])
    dec_out = [d - d // 4 for d in dec_in[1:]] + [n_item]
    proj_rev = list(proj)[::-1]
    for j in range(L):
        wd, bd = dec[j]
        if j == 0:
            top = z[-1] + h[-1]                # encoder state width
            w_top, w_bot = wd[:top], wd[top:]  # bottom rows fed by emb_pref
            cd = jnp.asarray(w_bot, jnp.float32)
            bfull = jnp.asarray(bd, jnp.float32)
        else:
            top = dec_out[j - 1]
            w_top, w_bot = wd[:top], wd[top:]  # bottom rows fed by proj(e)
            pw, pb = proj_rev[j - 1]
            cd = jnp.dot(pw, w_bot)
            bfull = bd + jnp.dot(pb, w_bot)
        weights += [w_cast(w_top), w_cast(cd), b_cast(bfull)]

    return weights


# -----------------------------------------------------------------------------
# Forward wrapper
# -----------------------------------------------------------------------------
_VMEM_LIMIT_BYTES = 32 * 1024 * 1024   # <= physical on v5e/v6e (128M) & v7x (64M)
_VMEM_ACT_BUDGET = 20 * 1024 * 1024    # activation/intermediate budget for TB
_TB_MAX = 512                          # 512-row tiles ~= 85%+ of HBM roofline


@functools.partial(jax.jit, static_argnames=("n_item", "dims", "use_bf16"))
def mymlp_forward(weights, x_t, probs, probs_mask, *, n_item, dims,
                  use_bf16=False):
    dims = tuple(int(d) for d in dims)
    _validate_dims(dims)
    L = len(dims)
    cond_dim = dims[-1] // 4
    compute_dtype = jnp.bfloat16 if use_bf16 else jnp.float32
    act_bytes = 2 if use_bf16 else 4

    B, in_dim = x_t.shape
    n_cate = probs.shape[1]

    # ---- batch tile selection (per review: as large as VMEM allows, but keep
    # >= 2 grid steps so v7x's two TensorCores are both used, and bound
    # batch-padding waste) ----
    z = [d // 2 for d in dims]
    h = [d // 2 - d // 4 for d in dims]
    dec_out = [d - d // 4 for d in dims[::-1][1:]] + [n_item]
    widths = [cond_dim] + [z[i] + h[i] for i in range(L)] + dec_out
    # generous per-row VMEM estimate: double-buffered in/out streams plus all
    # f32 intermediates assumed live simultaneously (x2 slack).
    row_bytes = (2 * act_bytes * (in_dim + n_cate)
                 + 2 * 4 * n_item
                 + 2 * 4 * sum(widths))
    tb = _TB_MAX
    tb = min(tb, max(8, _round_up(_cdiv(B, 2), 8)))   # >=2 tiles when B > 8
    while tb > 8 and tb * row_bytes > _VMEM_ACT_BUDGET:
        tb //= 2
    tb = max(8, _round_up(tb, 8))
    b_pad = _round_up(B, tb)

    # Fold the mask into probs (exact reference semantics, incl. NaN rows);
    # removes the (TB,1) keep stream and the in-kernel multiply.
    probs_m = jnp.where(probs_mask.reshape(B, 1) == 1,
                        jnp.zeros((), probs.dtype), probs)

    def pad_rows(a):
        return a if b_pad == B else jnp.pad(a, ((0, b_pad - B), (0, 0)))

    x_p = pad_rows(x_t).astype(compute_dtype)
    probs_p = pad_rows(probs_m).astype(compute_dtype)

    def act_spec(feat):
        return pl.BlockSpec((tb, feat), lambda i: (i, 0))

    def const_spec(arr):
        # Full-array block + constant index_map: DMA'd once at the prologue,
        # stays VMEM-resident across all batch tiles (weights are tiny).
        return pl.BlockSpec(arr.shape, lambda i: (0, 0))

    in_specs = ([act_spec(in_dim), act_spec(n_cate)]
                + [const_spec(w) for w in weights])
    # Unpadded lane width: per-row masked vst, but no 4x-padded writeback and
    # no separate wrapper slice pass over the output.
    out_spec = pl.BlockSpec((tb, n_item), lambda i: (i, 0))

    # Advisory cost estimate (helps XLA schedule around the custom call).
    bias_idx = {2} | {5 + 3 * k for k in range(2 * L - 1)}
    mm_per_row = sum(2 * int(w.shape[0]) * int(w.shape[1])
                     for i, w in enumerate(weights) if i not in bias_idx)
    tanh_per_row = sum(z[i] + h[i] for i in range(L)) + sum(dec_out[:-1])
    bytes_acc = (sum(int(np.prod(w.shape)) * w.dtype.itemsize for w in weights)
                 + b_pad * (in_dim + n_cate) * act_bytes
                 + b_pad * n_item * 4)

    out = pl.pallas_call(
        _make_kernel(L, compute_dtype),
        out_shape=jax.ShapeDtypeStruct((b_pad, n_item), jnp.float32),
        grid=(b_pad // tb,),
        in_specs=in_specs,
        out_specs=out_spec,
        compiler_params=pltpu.CompilerParams(
            dimension_semantics=("parallel",),
            vmem_limit_bytes=_VMEM_LIMIT_BYTES),
        cost_estimate=pl.CostEstimate(
            flops=b_pad * mm_per_row,
            transcendentals=b_pad * tanh_per_row,
            bytes_accessed=bytes_acc),
    )(x_p, probs_p, *weights)
    return out[:B]            # row slice only (no lane slice); no-op if b_pad == B


# -----------------------------------------------------------------------------
# Pure-JAX reference (mirrors the PyTorch eval forward, unoptimized structure)
# -----------------------------------------------------------------------------
def _reference(params, x, probs, probs_mask, dims):
    L = len(dims)
    cond_dim = dims[-1] // 4

    def linear(v, wb):
        w, b = wb
        return jnp.dot(v, w, preferred_element_type=jnp.float32) + b

    emb_pref = jnp.dot(probs, params["emb"], preferred_element_type=jnp.float32)
    emb_pref = jnp.where(probs_mask.reshape(-1, 1) == 1,
                         jnp.zeros_like(emb_pref), emb_pref)
    lz = x
    lh = x
    for idx in range(L):
        lz = jnp.tanh(linear(lz, params["enc_ind"][idx]))
        lh = jnp.tanh(linear(lh, params["enc_cate"][idx]))
        if lh.shape[-1] != cond_dim:
            pe = linear(emb_pref, params["proj"][idx])
        else:
            pe = emb_pref
        lat = jnp.concatenate([lz, lh, pe], axis=-1)
        lz = lat[:, :dims[idx] // 2]
        lh = lat[:, dims[idx] // 2:]
    latent = jnp.concatenate([lz, lh], axis=-1)

    proj_rev = params["proj"][::-1]
    cur = latent
    for idx in range(L - 1):
        cur = jnp.tanh(linear(cur, params["dec"][idx]))
        cur = jnp.concatenate([cur, linear(emb_pref, proj_rev[idx])], axis=-1)
    return linear(cur, params["dec"][L - 1])


# -----------------------------------------------------------------------------
# Demo / self-check
# -----------------------------------------------------------------------------
if __name__ == "__main__":
    n_item, n_cate, dim_step = 32, 8, 16
    dims = (64, 32)

    key = jax.random.PRNGKey(0)
    k_param, k_x, k_p, k_m = jax.random.split(key, 4)

    params = init_params(k_param, n_item, n_cate, dims, dim_step)
    w_f32 = prepare_weights(params, n_item=n_item, dims=dims, use_bf16=False)
    w_bf16 = prepare_weights(params, n_item=n_item, dims=dims, use_bf16=True)

    def make_inputs(B, mask_key):
        kx = jax.random.fold_in(k_x, B)
        kp = jax.random.fold_in(k_p, B)
        x_t = jax.random.normal(kx, (B, n_item + dim_step), jnp.float32)
        probs = jax.nn.softmax(
            jax.random.normal(kp, (B, n_cate), jnp.float32), axis=-1)
        mask = (jax.random.uniform(mask_key, (B,)) < 0.3).astype(jnp.int32)
        return x_t, probs, mask

    # Case 1: tiny batch (single tile, padded rows).
    x1 = jax.random.normal(k_x, (4, n_item + dim_step), jnp.float32)
    p1 = jax.nn.softmax(jax.random.normal(k_p, (4, n_cate), jnp.float32), -1)
    m1 = jnp.array([0, 1, 0, 0], dtype=jnp.int32)
    out1 = jax.block_until_ready(
        mymlp_forward(w_f32, x1, p1, m1, n_item=n_item, dims=dims))
    assert out1.shape == (4, n_item)
    ref1 = _reference(params, x1, p1, m1, dims)
    np.testing.assert_allclose(np.asarray(out1), np.asarray(ref1),
                               rtol=1e-4, atol=1e-4)

    # Case 2: larger batch -> multi-tile grid (>=2 steps) + batch padding.
    B2 = 130
    x2, p2, m2 = make_inputs(B2, k_m)
    out2 = jax.block_until_ready(
        mymlp_forward(w_f32, x2, p2, m2, n_item=n_item, dims=dims))
    assert out2.shape == (B2, n_item)
    ref2 = _reference(params, x2, p2, m2, dims)
    np.testing.assert_allclose(np.asarray(out2), np.asarray(ref2),
                               rtol=1e-4, atol=1e-4)

    # Case 3: bf16 MXU path (f32 accumulate), loose tolerance.
    out3 = jax.block_until_ready(
        mymlp_forward(w_bf16, x2, p2, m2, n_item=n_item, dims=dims,
                      use_bf16=True))
    assert out3.shape == (B2, n_item)
    np.testing.assert_allclose(np.asarray(out3), np.asarray(ref2),
                               rtol=0.1, atol=0.1)

    print("KERNEL_OK")
</pallas_src>

<mosaic_0001>
module attributes {stable_mosaic.version = 11 : i64} {
  func.func @kernel(%arg0: i32, %arg1: memref<8x48xf32, #tpu.memory_space<vmem>>, %arg2: memref<8x8xf32, #tpu.memory_space<vmem>>, %arg3: memref<8x8xf32, #tpu.memory_space<vmem>>, %arg4: memref<48x48xf32, #tpu.memory_space<vmem>>, %arg5: memref<1x48xf32, #tpu.memory_space<vmem>>, %arg6: memref<48x24xf32, #tpu.memory_space<vmem>>, %arg7: memref<8x24xf32, #tpu.memory_space<vmem>>, %arg8: memref<1x24xf32, #tpu.memory_space<vmem>>, %arg9: memref<24x48xf32, #tpu.memory_space<vmem>>, %arg10: memref<8x48xf32, #tpu.memory_space<vmem>>, %arg11: memref<1x48xf32, #tpu.memory_space<vmem>>, %arg12: memref<48x32xf32, #tpu.memory_space<vmem>>, %arg13: memref<8x32xf32, #tpu.memory_space<vmem>>, %arg14: memref<1x32xf32, #tpu.memory_space<vmem>>, %arg15: memref<8x32xf32, #tpu.memory_space<vmem>>) attributes {dimension_semantics = [#tpu.dimension_semantics<parallel>], iteration_bounds = array<i64: 1>, scalar_prefetch = 0 : i64, scratch_operands = 0 : i64, tpu.core_type = #tpu.core_type<tc>, window_params = [{transform_indices = @transform_0, window_bounds = array<i64: 8, 48>}, {transform_indices = @transform_1, window_bounds = array<i64: 8, 8>}, {pipeline_mode = #tpu.pipeline_mode<synchronous>, transform_indices = @transform_2, window_bounds = array<i64: 8, 8>}, {pipeline_mode = #tpu.pipeline_mode<synchronous>, transform_indices = @transform_3, window_bounds = array<i64: 48, 48>}, {pipeline_mode = #tpu.pipeline_mode<synchronous>, transform_indices = @transform_4, window_bounds = array<i64: 1, 48>}, {pipeline_mode = #tpu.pipeline_mode<synchronous>, transform_indices = @transform_5, window_bounds = array<i64: 48, 24>}, {pipeline_mode = #tpu.pipeline_mode<synchronous>, transform_indices = @transform_6, window_bounds = array<i64: 8, 24>}, {pipeline_mode = #tpu.pipeline_mode<synchronous>, transform_indices = @transform_7, window_bounds = array<i64: 1, 24>}, {pipeline_mode = #tpu.pipeline_mode<synchronous>, transform_indices = @transform_8, window_bounds = array<i64: 24, 48>}, {pipeline_mode = #tpu.pipeline_mode<synchronous>, transform_indices = @transform_9, window_bounds = array<i64: 8, 48>}, {pipeline_mode = #tpu.pipeline_mode<synchronous>, transform_indices = @transform_10, window_bounds = array<i64: 1, 48>}, {pipeline_mode = #tpu.pipeline_mode<synchronous>, transform_indices = @transform_11, window_bounds = array<i64: 48, 32>}, {pipeline_mode = #tpu.pipeline_mode<synchronous>, transform_indices = @transform_12, window_bounds = array<i64: 8, 32>}, {pipeline_mode = #tpu.pipeline_mode<synchronous>, transform_indices = @transform_13, window_bounds = array<i64: 1, 32>}, {transform_indices = @transform_14, window_bounds = array<i64: 8, 32>}]} {
    %c0 = arith.constant 0 : index
    %c0_0 = arith.constant 0 : index
    %0 = vector.load %arg3[%c0, %c0_0] : memref<8x8xf32, #tpu.memory_space<vmem>>, vector<8x8xf32>
    %c0_1 = arith.constant 0 : index
    %c0_2 = arith.constant 0 : index
    %1 = vector.load %arg4[%c0_1, %c0_2] : memref<48x48xf32, #tpu.memory_space<vmem>>, vector<48x48xf32>
    %c0_3 = arith.constant 0 : index
    %c0_4 = arith.constant 0 : index
    %2 = vector.load %arg5[%c0_3, %c0_4] : memref<1x48xf32, #tpu.memory_space<vmem>>, vector<1x48xf32>
    %c0_5 = arith.constant 0 : index
    %c0_6 = arith.constant 0 : index
    %3 = vector.load %arg6[%c0_5, %c0_6] : memref<48x24xf32, #tpu.memory_space<vmem>>, vector<48x24xf32>
    %c0_7 = arith.constant 0 : index
    %c0_8 = arith.constant 0 : index
    %4 = vector.load %arg7[%c0_7, %c0_8] : memref<8x24xf32, #tpu.memory_space<vmem>>, vector<8x24xf32>
    %c0_9 = arith.constant 0 : index
    %c0_10 = arith.constant 0 : index
    %5 = vector.load %arg8[%c0_9, %c0_10] : memref<1x24xf32, #tpu.memory_space<vmem>>, vector<1x24xf32>
    %c0_11 = arith.constant 0 : index
    %c0_12 = arith.constant 0 : index
    %6 = vector.load %arg9[%c0_11, %c0_12] : memref<24x48xf32, #tpu.memory_space<vmem>>, vector<24x48xf32>
    %c0_13 = arith.constant 0 : index
    %c0_14 = arith.constant 0 : index
    %7 = vector.load %arg10[%c0_13, %c0_14] : memref<8x48xf32, #tpu.memory_space<vmem>>, vector<8x48xf32>
    %c0_15 = arith.constant 0 : index
    %c0_16 = arith.constant 0 : index
    %8 = vector.load %arg11[%c0_15, %c0_16] : memref<1x48xf32, #tpu.memory_space<vmem>>, vector<1x48xf32>
    %c0_17 = arith.constant 0 : index
    %c0_18 = arith.constant 0 : index
    %9 = vector.load %arg12[%c0_17, %c0_18] : memref<48x32xf32, #tpu.memory_space<vmem>>, vector<48x32xf32>
    %c0_19 = arith.constant 0 : index
    %c0_20 = arith.constant 0 : index
    %10 = vector.load %arg13[%c0_19, %c0_20] : memref<8x32xf32, #tpu.memory_space<vmem>>, vector<8x32xf32>
    %c0_21 = arith.constant 0 : index
    %c0_22 = arith.constant 0 : index
    %11 = vector.load %arg14[%c0_21, %c0_22] : memref<1x32xf32, #tpu.memory_space<vmem>>, vector<1x32xf32>
    %c0_23 = arith.constant 0 : index
    %c0_24 = arith.constant 0 : index
    %12 = vector.load %arg2[%c0_23, %c0_24] : memref<8x8xf32, #tpu.memory_space<vmem>>, vector<8x8xf32>
    %cst = arith.constant dense<0.000000e+00> : vector<8x8xf32>
    %13 = tpu.matmul %12, %0, %cst {dimension_numbers = #tpu.dot_dimension_numbers<[1], [0], [0], [1], [0, 0, 1, 1], [], []>} : vector<8x8xf32>, vector<8x8xf32>, vector<8x8xf32> -> vector<8x8xf32>
    %c0_25 = arith.constant 0 : index
    %c0_26 = arith.constant 0 : index
    %14 = vector.load %arg1[%c0_25, %c0_26] : memref<8x48xf32, #tpu.memory_space<vmem>>, vector<8x48xf32>
    %cst_27 = arith.constant dense<0.000000e+00> : vector<8x48xf32>
    %15 = tpu.matmul %14, %1, %cst_27 {dimension_numbers = #tpu.dot_dimension_numbers<[1], [0], [0], [1], [0, 0, 1, 1], [], []>} : vector<8x48xf32>, vector<48x48xf32>, vector<8x48xf32> -> vector<8x48xf32>
    %16 = vector.broadcast %2 : vector<1x48xf32> to vector<8x48xf32>
    %17 = arith.addf %15, %16 : vector<8x48xf32>
    %18 = math.tanh %17 : vector<8x48xf32>
    %cst_28 = arith.constant dense<0.000000e+00> : vector<8x24xf32>
    %19 = tpu.matmul %18, %3, %cst_28 {dimension_numbers = #tpu.dot_dimension_numbers<[1], [0], [0], [1], [0, 0, 1, 1], [], []>} : vector<8x48xf32>, vector<48x24xf32>, vector<8x24xf32> -> vector<8x24xf32>
    %cst_29 = arith.constant dense<0.000000e+00> : vector<8x24xf32>
    %20 = tpu.matmul %13, %4, %cst_29 {dimension_numbers = #tpu.dot_dimension_numbers<[1], [0], [0], [1], [0, 0, 1, 1], [], []>} : vector<8x8xf32>, vector<8x24xf32>, vector<8x24xf32> -> vector<8x24xf32>
    %21 = arith.addf %19, %20 : vector<8x24xf32>
    %22 = vector.broadcast %5 : vector<1x24xf32> to vector<8x24xf32>
    %23 = arith.addf %21, %22 : vector<8x24xf32>
    %24 = math.tanh %23 : vector<8x24xf32>
    %cst_30 = arith.constant dense<0.000000e+00> : vector<8x48xf32>
    %25 = tpu.matmul %24, %6, %cst_30 {dimension_numbers = #tpu.dot_dimension_numbers<[1], [0], [0], [1], [0, 0, 1, 1], [], []>} : vector<8x24xf32>, vector<24x48xf32>, vector<8x48xf32> -> vector<8x48xf32>
    %cst_31 = arith.constant dense<0.000000e+00> : vector<8x48xf32>
    %26 = tpu.matmul %13, %7, %cst_31 {dimension_numbers = #tpu.dot_dimension_numbers<[1], [0], [0], [1], [0, 0, 1, 1], [], []>} : vector<8x8xf32>, vector<8x48xf32>, vector<8x48xf32> -> vector<8x48xf32>
    %27 = arith.addf %25, %26 : vector<8x48xf32>
    %28 = vector.broadcast %8 : vector<1x48xf32> to vector<8x48xf32>
    %29 = arith.addf %27, %28 : vector<8x48xf32>
    %30 = math.tanh %29 : vector<8x48xf32>
    %cst_32 = arith.constant dense<0.000000e+00> : vector<8x32xf32>
    %31 = tpu.matmul %30, %9, %cst_32 {dimension_numbers = #tpu.dot_dimension_numbers<[1], [0], [0], [1], [0, 0, 1, 1], [], []>} : vector<8x48xf32>, vector<48x32xf32>, vector<8x32xf32> -> vector<8x32xf32>
    %cst_33 = arith.constant dense<0.000000e+00> : vector<8x32xf32>
    %32 = tpu.matmul %13, %10, %cst_33 {dimension_numbers = #tpu.dot_dimension_numbers<[1], [0], [0], [1], [0, 0, 1, 1], [], []>} : vector<8x8xf32>, vector<8x32xf32>, vector<8x32xf32> -> vector<8x32xf32>
    %33 = arith.addf %31, %32 : vector<8x32xf32>
    %34 = vector.broadcast %11 : vector<1x32xf32> to vector<8x32xf32>
    %35 = arith.addf %33, %34 : vector<8x32xf32>
    %c0_34 = arith.constant 0 : index
    %c0_35 = arith.constant 0 : index
    %36 = vector.load %arg15[%c0_34, %c0_35] : memref<8x32xf32, #tpu.memory_space<vmem>>, vector<8x32xf32>
    tpu.vector_store %arg15[%c0_34, %c0_35], %35 {strides = array<i32>} : memref<8x32xf32, #tpu.memory_space<vmem>>, vector<8x32xf32>,
    return
  }
  func.func @transform_0(%arg0: i32) -> (i32, i32) {
    %c0_i32 = arith.constant 0 : i32
    %c0_i32_0 = arith.constant 0 : i32
    return %arg0, %c0_i32 : i32, i32
  }
  func.func @transform_1(%arg0: i32) -> (i32, i32) {
    %c0_i32 = arith.constant 0 : i32
    %c0_i32_0 = arith.constant 0 : i32
    return %arg0, %c0_i32 : i32, i32
  }
  func.func @transform_2(%arg0: i32) -> (i32, i32) {
    %c0_i32 = arith.constant 0 : i32
    %c0_i32_0 = arith.constant 0 : i32
    %c0_i32_1 = arith.constant 0 : i32
    return %c0_i32, %c0_i32_0 : i32, i32
  }
  func.func @transform_3(%arg0: i32) -> (i32, i32) {
    %c0_i32 = arith.constant 0 : i32
    %c0_i32_0 = arith.constant 0 : i32
    %c0_i32_1 = arith.constant 0 : i32
    return %c0_i32, %c0_i32_0 : i32, i32
  }
  func.func @transform_4(%arg0: i32) -> (i32, i32) {
    %c0_i32 = arith.constant 0 : i32
    %c0_i32_0 = arith.constant 0 : i32
    %c0_i32_1 = arith.constant 0 : i32
    return %c0_i32, %c0_i32_0 : i32, i32
  }
  func.func @transform_5(%arg0: i32) -> (i32, i32) {
    %c0_i32 = arith.constant 0 : i32
    %c0_i32_0 = arith.constant 0 : i32
    %c0_i32_1 = arith.constant 0 : i32
    return %c0_i32, %c0_i32_0 : i32, i32
  }
  func.func @transform_6(%arg0: i32) -> (i32, i32) {
    %c0_i32 = arith.constant 0 : i32
    %c0_i32_0 = arith.constant 0 : i32
    %c0_i32_1 = arith.constant 0 : i32
    return %c0_i32, %c0_i32_0 : i32, i32
  }
  func.func @transform_7(%arg0: i32) -> (i32, i32) {
    %c0_i32 = arith.constant 0 : i32
    %c0_i32_0 = arith.constant 0 : i32
    %c0_i32_1 = arith.constant 0 : i32
    return %c0_i32, %c0_i32_0 : i32, i32
  }
  func.func @transform_8(%arg0: i32) -> (i32, i32) {
    %c0_i32 = arith.constant 0 : i32
    %c0_i32_0 = arith.constant 0 : i32
    %c0_i32_1 = arith.constant 0 : i32
    return %c0_i32, %c0_i32_0 : i32, i32
  }
  func.func @transform_9(%arg0: i32) -> (i32, i32) {
    %c0_i32 = arith.constant 0 : i32
    %c0_i32_0 = arith.constant 0 : i32
    %c0_i32_1 = arith.constant 0 : i32
    return %c0_i32, %c0_i32_0 : i32, i32
  }
  func.func @transform_10(%arg0: i32) -> (i32, i32) {
    %c0_i32 = arith.constant 0 : i32
    %c0_i32_0 = arith.constant 0 : i32
    %c0_i32_1 = arith.constant 0 : i32
    return %c0_i32, %c0_i32_0 : i32, i32
  }
  func.func @transform_11(%arg0: i32) -> (i32, i32) {
    %c0_i32 = arith.constant 0 : i32
    %c0_i32_0 = arith.constant 0 : i32
    %c0_i32_1 = arith.constant 0 : i32
    return %c0_i32, %c0_i32_0 : i32, i32
  }
  func.func @transform_12(%arg0: i32) -> (i32, i32) {
    %c0_i32 = arith.constant 0 : i32
    %c0_i32_0 = arith.constant 0 : i32
    %c0_i32_1 = arith.constant 0 : i32
    return %c0_i32, %c0_i32_0 : i32, i32
  }
  func.func @transform_13(%arg0: i32) -> (i32, i32) {
    %c0_i32 = arith.constant 0 : i32
    %c0_i32_0 = arith.constant 0 : i32
    %c0_i32_1 = arith.constant 0 : i32
    return %c0_i32, %c0_i32_0 : i32, i32
  }
  func.func @transform_14(%arg0: i32) -> (i32, i32) {
    %c0_i32 = arith.constant 0 : i32
    %c0_i32_0 = arith.constant 0 : i32
    return %arg0, %c0_i32 : i32, i32
  }
}

</mosaic_0001>

<llo_original>
// kernel: mymlp_forward.1
$region0: #{mymlp_forward.1}
  #allocation0 [shape = 'u32[]', space=smem, size = 0x4, offset = 0x4, fixed_abs, tag = 'smem constant byte address 0x4 - core index']
  #allocation1 [shape = 'u32[72,128]{1,0:T(1,128)}', space=vmem, size = 0x9000, scoped, tag = 'internal scratch']
  %s0 = inlined_call_operand.vmem [shape: f32[8,48], index: 0, kind: input, shape index: {}]
  %s1 = inlined_call_operand.vmem [shape: f32[8,8], index: 1, kind: input, shape index: {}]
  %s2 = inlined_call_operand.vmem [shape: f32[8,8], index: 2, kind: input, shape index: {}]
  %s3 = inlined_call_operand.vmem [shape: f32[48,48], index: 3, kind: input, shape index: {}]
  %s4 = inlined_call_operand.vmem [shape: f32[1,48], index: 4, kind: input, shape index: {}]
  %s5 = inlined_call_operand.vmem [shape: f32[48,24], index: 5, kind: input, shape index: {}]
  %s6 = inlined_call_operand.vmem [shape: f32[8,24], index: 6, kind: input, shape index: {}]
  %s7 = inlined_call_operand.vmem [shape: f32[1,24], index: 7, kind: input, shape index: {}]
  %s8 = inlined_call_operand.vmem [shape: f32[24,48], index: 8, kind: input, shape index: {}]
  %s9 = inlined_call_operand.vmem [shape: f32[8,48], index: 9, kind: input, shape index: {}]
  %s10 = inlined_call_operand.vmem [shape: f32[1,48], index: 10, kind: input, shape index: {}]
  %s11 = inlined_call_operand.vmem [shape: f32[48,32], index: 11, kind: input, shape index: {}]
  %s12 = inlined_call_operand.vmem [shape: f32[8,32], index: 12, kind: input, shape index: {}]
  %s13 = inlined_call_operand.vmem [shape: f32[1,32], index: 13, kind: input, shape index: {}]
  %s14 = inlined_call_operand.vmem [shape: f32[8,32], index: 14, kind: output, shape index: {}]
  %s15 = sld [smem:[#allocation0]]
  $region66: #{mymlp_forward.1} parent=0
    _
  %s17 = ssub.s32 1, %s15
  %s18 = scalar_select 0, %s17, %s15
  // Predicated region
  $region2: #{mymlp_forward.1} parent=0 // pred_check
    _
  $region3: #{mymlp_forward.1} parent=0 // pred_check_branch
    %20 = sbr.rel (0) target = $region5
  $region4: #{mymlp_forward.1} parent=0 // pred_region
    _
  $region5: #{mymlp_forward.1} parent=0 // pred_fallthru
    _
  // Predicated region
  $region6: #{mymlp_forward.1} parent=0 // pred_check
    _
  $region7: #{mymlp_forward.1} parent=0 // pred_check_branch
    %22 = sbr.rel (0) target = $region9
  $region8: #{mymlp_forward.1} parent=0 // pred_region
    _
  $region9: #{mymlp_forward.1} parent=0 // pred_fallthru
    _
  // Predicated region
  $region10: #{mymlp_forward.1} parent=0 // pred_check
    _
  $region11: #{mymlp_forward.1} parent=0 // pred_check_branch
    %24 = sbr.rel (0) target = $region13
  $region12: #{mymlp_forward.1} parent=0 // pred_region
    _
  $region13: #{mymlp_forward.1} parent=0 // pred_fallthru
    _
  // Predicated region
  $region14: #{mymlp_forward.1} parent=0 // pred_check
    _
  $region15: #{mymlp_forward.1} parent=0 // pred_check_branch
    %26 = sbr.rel (0) target = $region17
  $region16: #{mymlp_forward.1} parent=0 // pred_region
    _
  $region17: #{mymlp_forward.1} parent=0 // pred_fallthru
    _
  // Predicated region
  $region18: #{mymlp_forward.1} parent=0 // pred_check
    _
  $region19: #{mymlp_forward.1} parent=0 // pred_check_branch
    %28 = sbr.rel (0) target = $region21
  $region20: #{mymlp_forward.1} parent=0 // pred_region
    _
  $region21: #{mymlp_forward.1} parent=0 // pred_fallthru
    _
  // Predicated region
  $region22: #{mymlp_forward.1} parent=0 // pred_check
    _
  $region23: #{mymlp_forward.1} parent=0 // pred_check_branch
    %30 = sbr.rel (0) target = $region25
  $region24: #{mymlp_forward.1} parent=0 // pred_region
    _
  $region25: #{mymlp_forward.1} parent=0 // pred_fallthru
    _
  // Predicated region
  $region26: #{mymlp_forward.1} parent=0 // pred_check
    _
  $region27: #{mymlp_forward.1} parent=0 // pred_check_branch
    %32 = sbr.rel (0) target = $region29
  $region28: #{mymlp_forward.1} parent=0 // pred_region
    _
  $region29: #{mymlp_forward.1} parent=0 // pred_fallthru
    _
  // Predicated region
  $region30: #{mymlp_forward.1} parent=0 // pred_check
    _
  $region31: #{mymlp_forward.1} parent=0 // pred_check_branch
    %34 = sbr.rel (0) target = $region33
  $region32: #{mymlp_forward.1} parent=0 // pred_region
    _
  $region33: #{mymlp_forward.1} parent=0 // pred_fallthru
    _
  // Predicated region
  $region34: #{mymlp_forward.1} parent=0 // pred_check
    _
  $region35: #{mymlp_forward.1} parent=0 // pred_check_branch
    %36 = sbr.rel (0) target = $region37
  $region36: #{mymlp_forward.1} parent=0 // pred_region
    _
  $region37: #{mymlp_forward.1} parent=0 // pred_fallthru
    _
  // Predicated region
  $region38: #{mymlp_forward.1} parent=0 // pred_check
    _
  $region39: #{mymlp_forward.1} parent=0 // pred_check_branch
    %38 = sbr.rel (0) target = $region41
  $region40: #{mymlp_forward.1} parent=0 // pred_region
    _
  $region41: #{mymlp_forward.1} parent=0 // pred_fallthru
    _
  // Predicated region
  $region42: #{mymlp_forward.1} parent=0 // pred_check
    _
  $region43: #{mymlp_forward.1} parent=0 // pred_check_branch
    %40 = sbr.rel (0) target = $region45
  $region44: #{mymlp_forward.1} parent=0 // pred_region
    _
  $region45: #{mymlp_forward.1} parent=0 // pred_fallthru
    _
  // Predicated region
  $region46: #{mymlp_forward.1} parent=0 // pred_check
    _
  $region47: #{mymlp_forward.1} parent=0 // pred_check_branch
    %42 = sbr.rel (0) target = $region49
  $region48: #{mymlp_forward.1} parent=0 // pred_region
    _
  $region49: #{mymlp_forward.1} parent=0 // pred_fallthru
    _
  // Predicated region
  $region50: #{mymlp_forward.1} parent=0 // pred_check
    _
  $region51: #{mymlp_forward.1} parent=0 // pred_check_branch
    %44 = sbr.rel (0) target = $region53
  $region52: #{mymlp_forward.1} parent=0 // pred_region
    _
  $region53: #{mymlp_forward.1} parent=0 // pred_fallthru
    _
  // Predicated region
  $region54: #{mymlp_forward.1} parent=0 // pred_check
    _
  $region55: #{mymlp_forward.1} parent=0 // pred_check_branch
    %46 = sbr.rel (0) target = $region57
  $region56: #{mymlp_forward.1} parent=0 // pred_region
    _
  $region57: #{mymlp_forward.1} parent=0 // pred_fallthru
    _
  %v47 = vld [vmem:[%s2] sm:$0xff]
  %v48 = vld [vmem:[%s3] sm:$0xff]
  %v49 = vld [vmem:[%s3 + $0x8] sm:$0xff]
  %v50 = vld [vmem:[%s3 + $0x10] sm:$0xff]
  %v51 = vld [vmem:[%s3 + $0x18] sm:$0xff]
  %v52 = vld [vmem:[%s3 + $0x20] sm:$0xff]
  %v53 = vld [vmem:[%s3 + $0x28] sm:$0xff]
  %v54 = vld [vmem:[%s4] sm:$0x1]
  %v55 = vld [vmem:[%s5] sm:$0xff]
  %v56 = vld [vmem:[%s5 + $0x8] sm:$0xff]
  %v57 = vld [vmem:[%s5 + $0x10] sm:$0xff]
  %v58 = vld [vmem:[%s5 + $0x18] sm:$0xff]
  %v59 = vld [vmem:[%s5 + $0x20] sm:$0xff]
  %v60 = vld [vmem:[%s5 + $0x28] sm:$0xff]
  %v61 = vld [vmem:[%s6] sm:$0xff]
  %v62 = vld [vmem:[%s7] sm:$0x1]
  %v63 = vld [vmem:[%s8] sm:$0xff]
  %v64 = vld [vmem:[%s8 + $0x8] sm:$0xff]
  %v65 = vld [vmem:[%s8 + $0x10] sm:$0xff]
  %v66 = vld [vmem:[%s9] sm:$0xff]
  %v67 = vld [vmem:[%s10] sm:$0x1]
  %v68 = vld [vmem:[%s11] sm:$0xff]
  %v69 = vld [vmem:[%s11 + $0x8] sm:$0xff]
  %v70 = vld [vmem:[%s11 + $0x10] sm:$0xff]
  %v71 = vld [vmem:[%s11 + $0x18] sm:$0xff]
  %v72 = vld [vmem:[%s11 + $0x20] sm:$0xff]
  %v73 = vld [vmem:[%s11 + $0x28] sm:$0xff]
  %v74 = vld [vmem:[%s12] sm:$0xff]
  %v75 = vld [vmem:[%s13] sm:$0x1]
  %v76 = vld [vmem:[%s1] sm:$0xff]
  %vm77 = vcmask 64512
  %v79 = vsel %vm77, %v76, 0
  %81 = vmatpush.msra.mxu0 0.0
  %82 = vmatpush.msra.mxu0 0.0
  %83 = vmatpush.msra.mxu0 0.0
  %84 = vmatpush.msra.mxu0 0.0
  %85 = vmatpush.msra.mxu0 0.0
  %86 = vmatpush.msra.mxu0 0.0
  %87 = vmatpush.msra.mxu0 0.0
  %88 = vmatpush.msra.mxu0 0.0
  %89 = vmatpush.msra.mxu0 0.0
  %90 = vmatpush.msra.mxu0 0.0
  %91 = vmatpush.msra.mxu0 0.0
  %92 = vmatpush.msra.mxu0 0.0
  %93 = vmatpush.msra.mxu0 0.0
  %94 = vmatpush.msra.mxu0 0.0
  %95 = vmatpush.msra.mxu0 0.0
  %96 = vmatpush.msra.mxu0 %v47
  %97 = vmatmul.f32.gmra.mxu0 %v79
  %v98 = vpop.f32.mrf.mxu0
  %v99 = vadd.f32 0.0, %v98
  %100 = vdwg.mxu0
  %v101 = vld [vmem:[%s0] sm:$0xff]
  %v103 = vperm.slane %v54, 0
  %vm105 = vcmask 392192
  %v107 = vsel %vm105, %v101, 0
  %109 = vmatpush.msra.mxu0 0.0
  %110 = vmatpush.msra.mxu0 0.0
  %111 = vmatpush.msra.mxu0 0.0
  %112 = vmatpush.msra.mxu0 0.0
  %113 = vmatpush.msra.mxu0 0.0
  %114 = vmatpush.msra.mxu0 0.0
  %115 = vmatpush.msra.mxu0 0.0
  %116 = vmatpush.msra.mxu0 0.0
  %117 = vmatpush.msra.mxu0 0.0
  %118 = vmatpush.msra.mxu0 0.0
  %119 = vmatpush.msra.mxu0 %v53
  %120 = vmatpush.msra.mxu0 %v52
  %121 = vmatpush.msra.mxu0 %v51
  %122 = vmatpush.msra.mxu0 %v50
  %123 = vmatpush.msra.mxu0 %v49
  %124 = vmatpush.msra.mxu0 %v48
  %125 = vmatmul.f32.gmra.mxu0 %v107
  %v126 = vpop.f32.mrf.mxu0
  %v127 = vadd.f32 %v103, %v126
  %128 = vdwg.mxu0
  %v129 = vtanh.pop %v127
  %v131 = vsel %vm77, %v99, 0
  %133 = vmatpush.msra.mxu0 0.0
  %134 = vmatpush.msra.mxu0 0.0
  %135 = vmatpush.msra.mxu0 0.0
  %136 = vmatpush.msra.mxu0 0.0
  %137 = vmatpush.msra.mxu0 0.0
  %138 = vmatpush.msra.mxu0 0.0
  %139 = vmatpush.msra.mxu0 0.0
  %140 = vmatpush.msra.mxu0 0.0
  %141 = vmatpush.msra.mxu0 0.0
  %142 = vmatpush.msra.mxu0 0.0
  %143 = vmatpush.msra.mxu0 0.0
  %144 = vmatpush.msra.mxu0 0.0
  %145 = vmatpush.msra.mxu0 0.0
  %146 = vmatpush.msra.mxu0 0.0
  %147 = vmatpush.msra.mxu0 0.0
  %148 = vmatpush.msra.mxu0 %v61
  %149 = vmatmul.f32.gmra.mxu0 %v131
  %v150 = vpop.f32.mrf.mxu0
  %v151 = vadd.f32 0.0, %v150
  %152 = vdwg.mxu0
  %v154 = vsel %vm105, %v129, 0
  %156 = vmatpush.msra.mxu0 0.0
  %157 = vmatpush.msra.mxu0 0.0
  %158 = vmatpush.msra.mxu0 0.0
  %159 = vmatpush.msra.mxu0 0.0
  %160 = vmatpush.msra.mxu0 0.0
  %161 = vmatpush.msra.mxu0 0.0
  %162 = vmatpush.msra.mxu0 0.0
  %163 = vmatpush.msra.mxu0 0.0
  %164 = vmatpush.msra.mxu0 0.0
  %165 = vmatpush.msra.mxu0 0.0
  %166 = vmatpush.msra.mxu0 %v60
  %167 = vmatpush.msra.mxu0 %v59
  %168 = vmatpush.msra.mxu0 %v58
  %169 = vmatpush.msra.mxu0 %v57
  %170 = vmatpush.msra.mxu0 %v56
  %171 = vmatpush.msra.mxu0 %v55
  %172 = vmatmul.f32.gmra.mxu0 %v154
  %v173 = vpop.f32.mrf.mxu0
  %v174 = vadd.f32 %v151, %v173
  %175 = vdwg.mxu0
  %v177 = vperm.slane %v62, 0
  %v179 = vadd.f32 %v174, %v177
  %v180 = vtanh.pop %v179
  %181 = vmatpush.msra.mxu0 0.0
  %182 = vmatpush.msra.mxu0 0.0
  %183 = vmatpush.msra.mxu0 0.0
  %184 = vmatpush.msra.mxu0 0.0
  %185 = vmatpush.msra.mxu0 0.0
  %186 = vmatpush.msra.mxu0 0.0
  %187 = vmatpush.msra.mxu0 0.0
  %188 = vmatpush.msra.mxu0 0.0
  %189 = vmatpush.msra.mxu0 0.0
  %190 = vmatpush.msra.mxu0 0.0
  %191 = vmatpush.msra.mxu0 0.0
  %192 = vmatpush.msra.mxu0 0.0
  %193 = vmatpush.msra.mxu0 0.0
  %194 = vmatpush.msra.mxu0 0.0
  %195 = vmatpush.msra.mxu0 0.0
  %196 = vmatpush.msra.mxu0 %v66
  %197 = vmatmul.f32.gmra.mxu0 %v131
  %v198 = vpop.f32.mrf.mxu0
  %v199 = vadd.f32 0.0, %v198
  %200 = vdwg.mxu0
  %vm201 = vcmask 195584
  %v203 = vsel %vm201, %v180, 0
  %205 = vmatpush.msra.mxu0 0.0
  %206 = vmatpush.msra.mxu0 0.0
  %207 = vmatpush.msra.mxu0 0.0
  %208 = vmatpush.msra.mxu0 0.0
  %209 = vmatpush.msra.mxu0 0.0
  %210 = vmatpush.msra.mxu0 0.0
  %211 = vmatpush.msra.mxu0 0.0
  %212 = vmatpush.msra.mxu0 0.0
  %213 = vmatpush.msra.mxu0 0.0
  %214 = vmatpush.msra.mxu0 0.0
  %215 = vmatpush.msra.mxu0 0.0
  %216 = vmatpush.msra.mxu0 0.0
  %217 = vmatpush.msra.mxu0 0.0
  %218 = vmatpush.msra.mxu0 %v65
  %219 = vmatpush.msra.mxu0 %v64
  %220 = vmatpush.msra.mxu0 %v63
  %221 = vmatmul.f32.gmra.mxu0 %v203
  %v222 = vpop.f32.mrf.mxu0
  %v223 = vadd.f32 %v199, %v222
  %224 = vdwg.mxu0
  %v226 = vperm.slane %v67, 0
  %v228 = vadd.f32 %v223, %v226
  %v229 = vtanh.pop %v228
  %230 = vmatpush.msra.mxu0 0.0
  %231 = vmatpush.msra.mxu0 0.0
  %232 = vmatpush.msra.mxu0 0.0
  %233 = vmatpush.msra.mxu0 0.0
  %234 = vmatpush.msra.mxu0 0.0
  %235 = vmatpush.msra.mxu0 0.0
  %236 = vmatpush.msra.mxu0 0.0
  %237 = vmatpush.msra.mxu0 0.0
  %238 = vmatpush.msra.mxu0 0.0
  %239 = vmatpush.msra.mxu0 0.0
  %240 = vmatpush.msra.mxu0 0.0
  %241 = vmatpush.msra.mxu0 0.0
  %242 = vmatpush.msra.mxu0 0.0
  %243 = vmatpush.msra.mxu0 0.0
  %244 = vmatpush.msra.mxu0 0.0
  %245 = vmatpush.msra.mxu0 %v74
  %246 = vmatmul.f32.gmra.mxu0 %v131
  %v247 = vpop.f32.mrf.mxu0
  %v248 = vadd.f32 0.0, %v247
  %249 = vdwg.mxu0
  %v251 = vsel %vm105, %v229, 0
  %253 = vmatpush.msra.mxu0 0.0
  %254 = vmatpush.msra.mxu0 0.0
  %255 = vmatpush.msra.mxu0 0.0
  %256 = vmatpush.msra.mxu0 0.0
  %257 = vmatpush.msra.mxu0 0.0
  %258 = vmatpush.msra.mxu0 0.0
  %259 = vmatpush.msra.mxu0 0.0
  %260 = vmatpush.msra.mxu0 0.0
  %261 = vmatpush.msra.mxu0 0.0
  %262 = vmatpush.msra.mxu0 0.0
  %263 = vmatpush.msra.mxu0 %v73
  %264 = vmatpush.msra.mxu0 %v72
  %265 = vmatpush.msra.mxu0 %v71
  %266 = vmatpush.msra.mxu0 %v70
  %267 = vmatpush.msra.mxu0 %v69
  %268 = vmatpush.msra.mxu0 %v68
  %269 = vmatmul.f32.gmra.mxu0 %v251
  %v270 = vpop.f32.mrf.mxu0
  %v271 = vadd.f32 %v248, %v270
  %272 = vdwg.mxu0
  %v274 = vperm.slane %v75, 0
  %v276 = vadd.f32 %v271, %v274
  %vm277 = vcmask 261120
  %278 = vst.msk [vmem:[%s14] sm:$0xff] %vm277, %v276
  // Predicated region
  $region58: #{mymlp_forward.1} parent=0 // pred_check
    _
  $region59: #{mymlp_forward.1} parent=0 // pred_check_branch
    %280 = sbr.rel (0) target = $region61
  $region60: #{mymlp_forward.1} parent=0 // pred_region
    _
  $region61: #{mymlp_forward.1} parent=0 // pred_fallthru
    _
  // Predicated region
  $region62: #{mymlp_forward.1} parent=0 // pred_check
    _
  $region63: #{mymlp_forward.1} parent=0 // pred_check_branch
    %282 = sbr.rel (0) target = $region65
  $region64: #{mymlp_forward.1} parent=0 // pred_region
    _
  $region65: #{mymlp_forward.1} parent=0 // pred_fallthru
    _

</llo_original>
